<compile_context>
chip_gen: v5e
topology: v5e:2x2
jax: 0.10.0
libtpu: 0.0.40
codegen_flags: <defaults>
</compile_context>

<pallas_src>
import functools

import jax
import jax.numpy as jnp
from jax.experimental import pallas as pl
from jax.experimental.pallas import tpu as pltpu

LANES = 128
_MIN_TILE_BYTES = 2 << 20   # 2 MiB: fits every default scoped-VMEM limit (v5e 16 MiB).
_MAX_TILE_BYTES = 8 << 20   # 8 MiB: enough to sit at the HBM roofline on v6e/v7x.


def _round_up(x: int, m: int) -> int:
    return ((x + m - 1) // m) * m


def _pick_tile_bytes_and_vmem_limit():
    """Generation-aware tile size (~VMEM/16, clamped) + matching scoped-VMEM limit."""
    try:
        vmem = int(pltpu.get_tpu_info().vmem_capacity_bytes)
    except Exception:
        # Hardware info unavailable (e.g. interpret mode): conservative defaults.
        return _MIN_TILE_BYTES, None
    tile = max(_MIN_TILE_BYTES, min(_MAX_TILE_BYTES, vmem // 16))
    # in + out, double-buffered = 4 tiles; add headroom, stay well under physical VMEM.
    vmem_limit = min(vmem * 3 // 4, max(4 * tile + (8 << 20), 32 << 20))
    return tile, vmem_limit


def _activation_cube_kernel(x_ref, o_ref):
    x = x_ref[...]
    cubed = x * x * x
    o_ref[...] = jnp.maximum(cubed, jnp.zeros_like(cubed))


@functools.partial(jax.jit, static_argnames=("donate",))
def activation_cube(x: jax.Array, *, donate: bool = False) -> jax.Array:
    """max(x**3, 0) applied elementwise; arbitrary input shape.

    Set donate=True only if the caller also donates `x` at the jit boundary;
    otherwise XLA inserts a protective full copy to satisfy the alias.
    """
    orig_shape = x.shape
    dtype = x.dtype
    n = x.size
    if n == 0:
        return x

    itemsize = jnp.dtype(dtype).itemsize
    x_flat = jnp.reshape(x, (n,))
    n_main = (n // LANES) * LANES          # lane-aligned bulk handled by the kernel
    tail = n - n_main                      # <128 leftover elements handled by jnp

    if n_main == 0:
        # Tiny input: not worth a kernel launch.
        return jnp.maximum(x * x * x, jnp.zeros_like(x))

    rows = n_main // LANES

    tile_bytes, vmem_limit = _pick_tile_bytes_and_vmem_limit()
    max_block_rows = max(8, (tile_bytes // (LANES * itemsize)) // 8 * 8)
    block_rows = min(rows, max_block_rows)
    # If everything fits in a single block, split it anyway so the "parallel"
    # grid axis has >=2 steps (lets v7x shard across both TensorCores).
    if block_rows == rows and rows >= 16:
        block_rows = _round_up(pl.cdiv(rows, 2), 8)
    grid = (pl.cdiv(rows, block_rows),)

    compiler_kwargs = dict(dimension_semantics=("parallel",))
    if vmem_limit is not None:
        compiler_kwargs["vmem_limit_bytes"] = int(vmem_limit)

    cost = pl.CostEstimate(
        flops=3 * n_main,
        transcendentals=0,
        bytes_accessed=2 * n_main * itemsize,  # read + write of the streamed bulk
    )

    pallas_kwargs = {}
    if donate:
        pallas_kwargs["input_output_aliases"] = {0: 0}

    x2d = jnp.reshape(x_flat[:n_main], (rows, LANES))
    out2d = pl.pallas_call(
        _activation_cube_kernel,
        out_shape=jax.ShapeDtypeStruct((rows, LANES), dtype),
        grid_spec=pltpu.PrefetchScalarGridSpec(
            num_scalar_prefetch=0,
            grid=grid,
            in_specs=[pl.BlockSpec((block_rows, LANES), lambda i: (i, 0))],
            out_specs=pl.BlockSpec((block_rows, LANES), lambda i: (i, 0)),
        ),
        compiler_params=pltpu.CompilerParams(**compiler_kwargs),
        cost_estimate=cost,
        **pallas_kwargs,
    )(x2d)
    out_main = jnp.reshape(out2d, (n_main,))

    if tail:
        t = x_flat[n_main:]
        t_cubed = t * t * t
        out_flat = jnp.concatenate(
            [out_main, jnp.maximum(t_cubed, jnp.zeros_like(t_cubed))]
        )
    else:
        out_flat = out_main
    return jnp.reshape(out_flat, orig_shape)


if __name__ == "__main__":
    key = jax.random.PRNGKey(0)
    # NCHW input, small shapes: batch=2, channels=4, spatial=16x16.
    x = jax.random.normal(key, (2, 4, 16, 16), dtype=jnp.float32)

    y = activation_cube(x)
    y = jax.block_until_ready(y)

    # Reference check against plain JAX.
    y_ref = jnp.maximum(x ** 3, 0.0)
    assert y.shape == x.shape and y.dtype == x.dtype
    assert jnp.allclose(y, y_ref, atol=1e-6, rtol=1e-6)

    # Also exercise an unaligned size (no pad/slice passes, tail handled by jnp).
    x_odd = jax.random.normal(jax.random.PRNGKey(0), (3, 5, 7), dtype=jnp.float32)
    y_odd = jax.block_until_ready(activation_cube(x_odd))
    assert jnp.allclose(y_odd, jnp.maximum(x_odd ** 3, 0.0), atol=1e-6, rtol=1e-6)

    print("KERNEL_OK")
</pallas_src>

<mosaic_0001>
module attributes {stable_mosaic.version = 11 : i64} {
  func.func @_activation_cube_kernel(%arg0: i32, %arg1: memref<8x128xf32, #tpu.memory_space<vmem>>, %arg2: memref<8x128xf32, #tpu.memory_space<vmem>>) attributes {dimension_semantics = [#tpu.dimension_semantics<parallel>], iteration_bounds = array<i64: 2>, scalar_prefetch = 0 : i64, scratch_operands = 0 : i64, tpu.core_type = #tpu.core_type<tc>, window_params = [{transform_indices = @transform_0, window_bounds = array<i64: 8, 128>}, {transform_indices = @transform_1, window_bounds = array<i64: 8, 128>}]} {
    %c0 = arith.constant 0 : index
    %c0_0 = arith.constant 0 : index
    %0 = vector.load %arg1[%c0, %c0_0] : memref<8x128xf32, #tpu.memory_space<vmem>>, vector<8x128xf32>
    %1 = arith.mulf %0, %0 : vector<8x128xf32>
    %2 = arith.mulf %1, %0 : vector<8x128xf32>
    %cst = arith.constant 0.000000e+00 : f32
    %3 = vector.broadcast %cst : f32 to vector<8x128xf32>
    %4 = arith.maximumf %2, %3 : vector<8x128xf32>
    %c0_1 = arith.constant 0 : index
    %c0_2 = arith.constant 0 : index
    %5 = vector.load %arg2[%c0_1, %c0_2] : memref<8x128xf32, #tpu.memory_space<vmem>>, vector<8x128xf32>
    tpu.vector_store %arg2[%c0_1, %c0_2], %4 {strides = array<i32>} : memref<8x128xf32, #tpu.memory_space<vmem>>, vector<8x128xf32>,
    return
  }
  func.func @transform_0(%arg0: i32) -> (i32, i32) {
    %c0_i32 = arith.constant 0 : i32
    %c0_i32_0 = arith.constant 0 : i32
    return %arg0, %c0_i32 : i32, i32
  }
  func.func @transform_1(%arg0: i32) -> (i32, i32) {
    %c0_i32 = arith.constant 0 : i32
    %c0_i32_0 = arith.constant 0 : i32
    return %arg0, %c0_i32 : i32, i32
  }
}

</mosaic_0001>

<llo_original>
// kernel: activation_cube.1
$region0: #{activation_cube.1}
  #allocation0 [shape = 'u32[]', space=smem, size = 0x4, offset = 0x4, fixed_abs, tag = 'smem constant byte address 0x4 - core index']
  #allocation1 [shape = 'u32[72,128]{1,0:T(1,128)}', space=vmem, size = 0x9000, scoped, tag = 'internal scratch']
  %s0 = inlined_call_operand.vmem [shape: f32[16,128], index: 0, kind: input, shape index: {}]
  %s1 = inlined_call_operand.vmem [shape: f32[16,128], index: 1, kind: output, shape index: {}]
  %s2 = sld [smem:[#allocation0]]
  $region37: #{activation_cube.1} parent=0
    _
  %s4 = ssub.s32 1, %s2
  %s5 = scalar_select 0, %s4, %s2
  loop: start=0, step=1, limit=4
  $region2: #{activation_cube.1} parent=0 // loop_pre_header
    _
  $region3: #{activation_cube.1} parent=0 // loop_header
    %s7 = sphi 0, %s11
    %p8 = scmp.ge.s32.totalorder %s7, 4
    %s17 = sphi 0, %s19
    %s20 = sphi 0, %s17
    %s21 = sphi 0, %s20
    %s37 = sphi 0, %s21
    %s43 = sphi 0, %s45
    %s46 = sphi 0, %s43
    %s47 = sphi 0, %s46
    %s63 = sphi 0, %s47
  $region4: #{activation_cube.1} parent=0 // loop_header_branch
    %10 = sbr.rel (%p8) target = $region8
  $region5: #{activation_cube.1} parent=0 // loop_body
    %s12 = ssub.s32 %s7, 1
    %s13 = ssub.s32 %s7, 2
    %s14 = sadd.s32 %s7, 1
    %s15 = ssub.s32 %s7, %s14
    %p16 = scmp.eq.s32.totalorder %s15, 0
    %s18 = sadd.s32 %s17, 1
    %s19 = scalar_select %p16, %s17, %s18
    %p22 = pneg %p16
    %p23 = scmp.eq.s32.totalorder %s7, 1
    %p24 = por %p22, %p23
    %p25 = scmp.ne.s32.totalorder %s17, %s20
    %p26 = scmp.eq.s32.totalorder %s7, 0
    %p27 = por %p25, %p26
    %p28 = scmp.ne.s32.totalorder %s17, %s20
    %p29 = scmp.eq.s32.totalorder %s12, 1
    %p30 = por %p28, %p29
    %p31 = scmp.ne.s32.totalorder %s20, %s21
    %p32 = scmp.eq.s32.totalorder %s12, 0
    %p33 = por %p31, %p32
    %p34 = scmp.ne.s32.totalorder %s20, %s21
    %p35 = scmp.eq.s32.totalorder %s13, 1
    %p36 = por %p34, %p35
    %p38 = scmp.ne.s32.totalorder %s21, %s37
    %p39 = scmp.eq.s32.totalorder %s13, 0
    %p40 = por %p38, %p39
    %s41 = ssub.s32 %s7, %s14
    %p42 = scmp.eq.s32.totalorder %s41, 0
    %s44 = sadd.s32 %s43, 1
    %s45 = scalar_select %p42, %s43, %s44
    %p48 = pneg %p42
    %p49 = scmp.eq.s32.totalorder %s7, 1
    %p50 = por %p48, %p49
    %p51 = scmp.ne.s32.totalorder %s43, %s46
    %p52 = scmp.eq.s32.totalorder %s7, 0
    %p53 = por %p51, %p52
    %p54 = scmp.ne.s32.totalorder %s43, %s46
    %p55 = scmp.eq.s32.totalorder %s12, 1
    %p56 = por %p54, %p55
    %p57 = scmp.ne.s32.totalorder %s46, %s47
    %p58 = scmp.eq.s32.totalorder %s12, 0
    %p59 = por %p57, %p58
    %p60 = scmp.ne.s32.totalorder %s46, %s47
    %p61 = scmp.eq.s32.totalorder %s13, 1
    %p62 = por %p60, %p61
    %p64 = scmp.ne.s32.totalorder %s47, %s63
    %p65 = scmp.eq.s32.totalorder %s13, 0
    %p66 = por %p64, %p65
    %p67 = scmp.le.s32.totalorder 1, %s7
    %p68 = scmp.lt.s32.totalorder %s7, 3
    %p69 = pnand %p67, %p68
    %p70 = pneg %p69
    // Predicated region
    $region9: #{activation_cube.1} parent=5 // pred_check
      _
    $region10: #{activation_cube.1} parent=5 // pred_check_branch
      %72 = sbr.rel (%p69) target = $region12
    $region11: #{activation_cube.1} parent=5 // pred_region
      %s73 = ssub.s32 %s7, 1
    $region12: #{activation_cube.1} parent=5 // pred_fallthru
      _
    %p74 = scmp.lt.s32.totalorder %s7, 2
    // Predicated region
    $region13: #{activation_cube.1} parent=5 // pred_check
      %p75 = pneg %p74
    $region14: #{activation_cube.1} parent=5 // pred_check_branch
      %77 = sbr.rel (%p75) target = $region16
    $region15: #{activation_cube.1} parent=5 // pred_region
      // Predicated region
      $region17: #{activation_cube.1} parent=15 // pred_check
        %p78 = pneg %p27
      $region18: #{activation_cube.1} parent=15 // pred_check_branch
        %80 = sbr.rel (%p78) target = $region20
      $region19: #{activation_cube.1} parent=15 // pred_region
        %p81 = scmp.lt.s32.totalorder %s7, 1
        %s82 = scalar_select %p81, %s7, 1
        %s83 = smul.addr %s82, 8
        %s84 = scalar_lea.vmem %s0, %s83
      $region20: #{activation_cube.1} parent=15 // pred_fallthru
        _
    $region16: #{activation_cube.1} parent=5 // pred_fallthru
      _
    %p85 = scmp.le.s32.totalorder 1, %s7
    %p86 = scmp.lt.s32.totalorder %s7, 3
    %p87 = pnand %p85, %p86
    %p88 = pneg %p87
    // Predicated region
    $region21: #{activation_cube.1} parent=5 // pred_check
      _
    $region22: #{activation_cube.1} parent=5 // pred_check_branch
      %90 = sbr.rel (%p87) target = $region24
    $region23: #{activation_cube.1} parent=5 // pred_region
      %s91 = ssub.s32 %s7, 1
      %p92 = scmp.lt.s32.totalorder %s12, 1
      %s93 = scalar_select %p92, %s12, 1
      %s94 = smul.addr %s93, 8
      %s95 = scalar_lea.vmem %s0, %s94
      %p96 = pneg %p33
      %p97 = pneg %p30
      %p98 = pneg %p59
      %p99 = pneg %p56
      %p100 = scmp.lt.s32.totalorder %s12, 1
      %s101 = scalar_select %p100, %s12, 1
      %s102 = smul.addr %s101, 8
      %s103 = scalar_lea.vmem %s1, %s102
      %p104 = scmp.lt.s32.totalorder %s12, 1
      %s105 = scalar_select %p104, %s12, 1
      %s106 = smul.addr %s105, 8
      %s107 = scalar_lea.vmem %s0, %s106
      %p108 = scmp.lt.s32.totalorder %s12, 1
      %s109 = scalar_select %p108, %s12, 1
      %s110 = smul.addr %s109, 8
      %s111 = scalar_lea.vmem %s1, %s110
      %v112 = vld [vmem:[%s107] sm:$0xff]
      %v113 = vmul.f32 %v112, %v112
      %v114 = vmul.f32 %v113, %v112
      %v115 = vmax.f32 %v114, 0.0
      %116 = vst [vmem:[%s111] sm:$0xff] %v115
      %p117 = scmp.lt.s32.totalorder %s12, 1
      %s118 = scalar_select %p117, %s12, 1
      %s119 = smul.addr %s118, 8
      %s120 = scalar_lea.vmem %s1, %s119
      // Predicated region
      $region25: #{activation_cube.1} parent=23 // pred_check
        %p121 = pneg %p56
      $region26: #{activation_cube.1} parent=23 // pred_check_branch
        %123 = sbr.rel (%p121) target = $region28
      $region27: #{activation_cube.1} parent=23 // pred_region
        _
      $region28: #{activation_cube.1} parent=23 // pred_fallthru
        _
    $region24: #{activation_cube.1} parent=5 // pred_fallthru
      _
    %p124 = scmp.le.s32.totalorder 2, %s7
    // Predicated region
    $region29: #{activation_cube.1} parent=5 // pred_check
      %p125 = pneg %p124
    $region30: #{activation_cube.1} parent=5 // pred_check_branch
      %127 = sbr.rel (%p125) target = $region32
    $region31: #{activation_cube.1} parent=5 // pred_region
      %s128 = ssub.s32 %s7, 2
      // Predicated region
      $region33: #{activation_cube.1} parent=31 // pred_check
        %p129 = pneg %p62
      $region34: #{activation_cube.1} parent=31 // pred_check_branch
        %131 = sbr.rel (%p129) target = $region36
      $region35: #{activation_cube.1} parent=31 // pred_region
        %p132 = scmp.lt.s32.totalorder %s13, 1
        %s133 = scalar_select %p132, %s13, 1
        %s134 = smul.addr %s133, 8
        %s135 = scalar_lea.vmem %s1, %s134
      $region36: #{activation_cube.1} parent=31 // pred_fallthru
        _
    $region32: #{activation_cube.1} parent=5 // pred_fallthru
      _
  $region6: #{activation_cube.1} parent=0 // loop_footer
    %s11 = sadd.s32 1, %s7
  $region7: #{activation_cube.1} parent=0 // loop_footer_branch
    %6 = sbr.rel target = $region3
  $region8: #{activation_cube.1} parent=0 // loop_exit
    _

</llo_original>
